<compile_context>
chip_gen: v7x
topology: tpu7x:2x2x1
jax: 0.10.0
libtpu: 0.0.40
codegen_flags: <defaults>
</compile_context>

<pallas_src>
import jax
import jax.numpy as jnp
from jax.experimental import pallas as pl
from jax.experimental.pallas import tpu as pltpu

L = 10          # number of parallel rollouts (rows of the state)
STATE_DIM = 5
ACTION_DIM = 1
T = 100         # simulation horizon

_HDIM = STATE_DIM + 1   # 6: homogeneous affine dimension ([state, 1])
_HPAD = 8               # sublane-aligned scratch size for H

# Number of tiny matmuls in the binary-exponentiation chain (for the cost hint).
_N_SQUARINGS = max(T.bit_length() - 1, 0)
_N_MERGES = max(bin(T).count("1") - 1, 0)
_N_MATMULS = _N_SQUARINGS + _N_MERGES


def _vpu_matmul(a, b, k):
    """Tiny (m,k)@(k,n) matmul as k unrolled broadcast multiply-adds on the VPU (no MXU)."""
    acc = a[:, 0:1] * b[0:1, :]
    for i in range(1, k):
        acc = acc + a[:, i:i + 1] * b[i:i + 1, :]
    return acc


def simulation_kernel(state_ref, ad_ref, wc_ref, bd_ref, bc_ref, o_ref, h_ref):
    state = state_ref[...]     # (L, 5)
    ad = ad_ref[...]           # (5, 5)
    wc = wc_ref[...]           # (5, 1)
    bd = bd_ref[...]           # (1, 5)
    bc = bc_ref[...]           # (1, 1)

    # Fold controller into dynamics: one affine step  s' = s @ M + c.
    m = ad + wc * bd           # (5,5) = Ad + Wc @ Bd   (outer product; ACTION_DIM == 1)
    c = bc * bd                # (1,5) = bc @ Bd

    # Assemble the homogeneous map  H = [[M, 0], [c, 1]]  (6x6, zero-padded to 8x8) in an
    # aligned VMEM scratch using only masked sub-stores (no concat / unaligned packing).
    row_i = jax.lax.broadcasted_iota(jnp.int32, (_HPAD, _HPAD), 0)
    col_i = jax.lax.broadcasted_iota(jnp.int32, (_HPAD, _HPAD), 1)
    h_ref[...] = jnp.where((row_i == STATE_DIM) & (col_i == STATE_DIM),
                           1.0, 0.0).astype(jnp.float32)
    h_ref[0:STATE_DIM, 0:STATE_DIM] = m
    h_ref[STATE_DIM:STATE_DIM + 1, 0:STATE_DIM] = c
    h = h_ref[...]             # (8,8); rows/cols >= 6 are zero, so k=6 MACs are exact

    # H^T via binary exponentiation over the single homogeneous matrix, fully unrolled
    # at trace time (~8 tiny 6-wide matmuls for T=100).
    h_pow = h                  # H^(2^k)
    h_res = None               # H^(bits of T consumed so far)
    n = T
    while n > 0:
        if n & 1:
            h_res = h_pow if h_res is None else _vpu_matmul(h_res, h_pow, _HDIM)
        n >>= 1
        if n > 0:
            h_pow = _vpu_matmul(h_pow, h_pow, _HDIM)

    if h_res is None:          # T == 0: identity rollout
        final_state = state
    else:
        # [s, 1] @ H^T  ->  s @ H^T[0:5,0:5] + H^T[5,0:5]; no explicit state augmentation.
        m_fin = h_res[0:STATE_DIM, 0:STATE_DIM]              # (5,5)
        c_fin = h_res[STATE_DIM:STATE_DIM + 1, 0:STATE_DIM]  # (1,5), broadcast over L rows
        final_state = _vpu_matmul(state, m_fin, STATE_DIM) + c_fin

    # error(state) = sum(state ** 2)  -> scalar
    o_ref[0, 0] = jnp.sum(final_state * final_state)
    # TODO(synk): state_trajectory / action_trajectory Python-list side effects of the module
    # are not materialized (the matrix-power shortcut would be invalid if they were consumed).


@jax.jit
def simulation_forward(state, wc, bc, ad, bd):
    # Five raw inputs straight into VMEM: no wrapper-side packing fusion, no extra HBM trip.
    out = pl.pallas_call(
        simulation_kernel,
        out_shape=jax.ShapeDtypeStruct((1, 1), jnp.float32),
        in_specs=[pl.BlockSpec(memory_space=pltpu.MemorySpace.VMEM)] * 5,
        out_specs=pl.BlockSpec(memory_space=pltpu.MemorySpace.SMEM),
        scratch_shapes=[pltpu.VMEM((_HPAD, _HPAD), jnp.float32)],
        cost_estimate=pl.CostEstimate(
            flops=(_N_MATMULS * 2 * _HDIM * _HPAD * _HPAD          # power chain
                   + 2 * L * STATE_DIM * STATE_DIM                 # final state apply
                   + 2 * STATE_DIM * STATE_DIM                     # M fold
                   + 2 * L * STATE_DIM),                           # squared-sum reduction
            transcendentals=0,
            bytes_accessed=4 * (L * STATE_DIM + STATE_DIM * STATE_DIM
                                + STATE_DIM * ACTION_DIM + ACTION_DIM * STATE_DIM
                                + ACTION_DIM) + 4),
    )(state, ad, wc, bd, bc)
    return out[0, 0]


@jax.jit
def reference_forward(state, wc, bc, ad, bd):
    def step(_, s):
        a = s @ wc + bc
        return s @ ad + a @ bd
    s = jax.lax.fori_loop(0, T, step, state)
    return jnp.sum(s * s)


if __name__ == "__main__":
    key = jax.random.PRNGKey(0)
    k_state, k_wc, k_bc, k_ad, k_bd = jax.random.split(key, 5)

    # initialize_state(): rand((L,5)) with columns 1 and 3 zeroed (velocities start at 0).
    state = jax.random.uniform(k_state, (L, STATE_DIM), dtype=jnp.float32)
    state = state.at[:, 1].set(0.0)
    state = state.at[:, 3].set(0.0)

    # Deterministic synthetic controller / dynamics parameters (scaled for stability over T=100).
    wc = 0.1 * jax.random.normal(k_wc, (STATE_DIM, ACTION_DIM), dtype=jnp.float32)
    bc = 0.1 * jax.random.normal(k_bc, (1, ACTION_DIM), dtype=jnp.float32)
    ad = (0.90 * jnp.eye(STATE_DIM, dtype=jnp.float32)
          + 0.05 * jax.random.normal(k_ad, (STATE_DIM, STATE_DIM), dtype=jnp.float32))
    bd = 0.1 * jax.random.normal(k_bd, (ACTION_DIM, STATE_DIM), dtype=jnp.float32)

    err = jax.block_until_ready(simulation_forward(state, wc, bc, ad, bd))
    ref = jax.block_until_ready(reference_forward(state, wc, bc, ad, bd))

    assert jnp.isfinite(err), "kernel produced non-finite error"
    # Matrix-power rollout reassociates FP ops; allow a small (still tight) relative tolerance.
    assert jnp.allclose(err, ref, rtol=1e-3, atol=1e-6), (err, ref)
    print("KERNEL_OK")
</pallas_src>

<mosaic_0001>
module attributes {stable_mosaic.version = 11 : i64} {
  func.func @simulation_kernel(%arg0: memref<10x5xf32, #tpu.memory_space<vmem>>, %arg1: memref<5x5xf32, #tpu.memory_space<vmem>>, %arg2: memref<5x1xf32, #tpu.memory_space<vmem>>, %arg3: memref<1x5xf32, #tpu.memory_space<vmem>>, %arg4: memref<1x1xf32, #tpu.memory_space<vmem>>, %arg5: memref<1x1xf32, #tpu.memory_space<smem>>, %arg6: memref<8x8xf32, #tpu.memory_space<vmem>>) attributes {dimension_semantics = [], scalar_prefetch = 0 : i64, scratch_operands = 1 : i64, tpu.core_type = #tpu.core_type<tc>} {
    %c0 = arith.constant 0 : index
    %c0_0 = arith.constant 0 : index
    %0 = vector.load %arg0[%c0, %c0_0] : memref<10x5xf32, #tpu.memory_space<vmem>>, vector<10x5xf32>
    %c0_1 = arith.constant 0 : index
    %c0_2 = arith.constant 0 : index
    %1 = vector.load %arg1[%c0_1, %c0_2] : memref<5x5xf32, #tpu.memory_space<vmem>>, vector<5x5xf32>
    %c0_3 = arith.constant 0 : index
    %c0_4 = arith.constant 0 : index
    %2 = vector.load %arg2[%c0_3, %c0_4] : memref<5x1xf32, #tpu.memory_space<vmem>>, vector<5x1xf32>
    %c0_5 = arith.constant 0 : index
    %c0_6 = arith.constant 0 : index
    %3 = vector.load %arg3[%c0_5, %c0_6] : memref<1x5xf32, #tpu.memory_space<vmem>>, vector<1x5xf32>
    %c0_7 = arith.constant 0 : index
    %c0_8 = arith.constant 0 : index
    %4 = vector.load %arg4[%c0_7, %c0_8] : memref<1x1xf32, #tpu.memory_space<vmem>>, vector<1x1xf32>
    %5 = vector.broadcast %2 : vector<5x1xf32> to vector<5x5xf32>
    %6 = vector.broadcast %3 : vector<1x5xf32> to vector<5x5xf32>
    %7 = arith.mulf %5, %6 : vector<5x5xf32>
    %8 = arith.addf %1, %7 : vector<5x5xf32>
    %9 = vector.broadcast %4 : vector<1x1xf32> to vector<1x5xf32>
    %10 = arith.mulf %9, %3 : vector<1x5xf32>
    %11 = tpu.iota {dimensions = array<i32: 0>} : vector<8x8xi32>
    %12 = tpu.iota {dimensions = array<i32: 1>} : vector<8x8xi32>
    %c5_i32 = arith.constant 5 : i32
    %13 = vector.broadcast %c5_i32 : i32 to vector<8x8xi32>
    %14 = arith.cmpi eq, %11, %13 : vector<8x8xi32>
    %c5_i32_9 = arith.constant 5 : i32
    %15 = vector.broadcast %c5_i32_9 : i32 to vector<8x8xi32>
    %16 = arith.cmpi eq, %12, %15 : vector<8x8xi32>
    %17 = arith.andi %14, %16 : vector<8x8xi1>
    %cst = arith.constant 1.000000e+00 : f32
    %cst_10 = arith.constant 0.000000e+00 : f32
    %18 = vector.broadcast %cst : f32 to vector<8x8xf32>
    %19 = vector.broadcast %cst_10 : f32 to vector<8x8xf32>
    %20 = arith.select %17, %18, %19 : vector<8x8xi1>, vector<8x8xf32>
    %c0_11 = arith.constant 0 : index
    %c0_12 = arith.constant 0 : index
    %21 = vector.load %arg6[%c0_11, %c0_12] : memref<8x8xf32, #tpu.memory_space<vmem>>, vector<8x8xf32>
    tpu.vector_store %arg6[%c0_11, %c0_12], %20 {strides = array<i32>} : memref<8x8xf32, #tpu.memory_space<vmem>>, vector<8x8xf32>,
    %c0_13 = arith.constant 0 : index
    %c0_14 = arith.constant 0 : index
    %22 = vector.load %arg6[%c0_13, %c0_14] : memref<8x8xf32, #tpu.memory_space<vmem>>, vector<5x5xf32>
    tpu.vector_store %arg6[%c0_13, %c0_14], %8 {strides = array<i32>} : memref<8x8xf32, #tpu.memory_space<vmem>>, vector<5x5xf32>,
    %c5 = arith.constant 5 : index
    %c0_15 = arith.constant 0 : index
    %23 = vector.load %arg6[%c5, %c0_15] : memref<8x8xf32, #tpu.memory_space<vmem>>, vector<1x5xf32>
    tpu.vector_store %arg6[%c5, %c0_15], %10 {strides = array<i32>} : memref<8x8xf32, #tpu.memory_space<vmem>>, vector<1x5xf32>,
    %c0_16 = arith.constant 0 : index
    %c0_17 = arith.constant 0 : index
    %24 = vector.load %arg6[%c0_16, %c0_17] : memref<8x8xf32, #tpu.memory_space<vmem>>, vector<8x8xf32>
    %25 = vector.extract_strided_slice %24 {offsets = [0, 0], sizes = [8, 1], strides = [1, 1]} : vector<8x8xf32> to vector<8x1xf32>
    %26 = vector.extract_strided_slice %24 {offsets = [0, 0], sizes = [1, 8], strides = [1, 1]} : vector<8x8xf32> to vector<1x8xf32>
    %27 = vector.broadcast %25 : vector<8x1xf32> to vector<8x8xf32>
    %28 = vector.broadcast %26 : vector<1x8xf32> to vector<8x8xf32>
    %29 = arith.mulf %27, %28 : vector<8x8xf32>
    %30 = vector.extract_strided_slice %24 {offsets = [0, 1], sizes = [8, 1], strides = [1, 1]} : vector<8x8xf32> to vector<8x1xf32>
    %31 = vector.extract_strided_slice %24 {offsets = [1, 0], sizes = [1, 8], strides = [1, 1]} : vector<8x8xf32> to vector<1x8xf32>
    %32 = vector.broadcast %30 : vector<8x1xf32> to vector<8x8xf32>
    %33 = vector.broadcast %31 : vector<1x8xf32> to vector<8x8xf32>
    %34 = arith.mulf %32, %33 : vector<8x8xf32>
    %35 = arith.addf %29, %34 : vector<8x8xf32>
    %36 = vector.extract_strided_slice %24 {offsets = [0, 2], sizes = [8, 1], strides = [1, 1]} : vector<8x8xf32> to vector<8x1xf32>
    %37 = vector.extract_strided_slice %24 {offsets = [2, 0], sizes = [1, 8], strides = [1, 1]} : vector<8x8xf32> to vector<1x8xf32>
    %38 = vector.broadcast %36 : vector<8x1xf32> to vector<8x8xf32>
    %39 = vector.broadcast %37 : vector<1x8xf32> to vector<8x8xf32>
    %40 = arith.mulf %38, %39 : vector<8x8xf32>
    %41 = arith.addf %35, %40 : vector<8x8xf32>
    %42 = vector.extract_strided_slice %24 {offsets = [0, 3], sizes = [8, 1], strides = [1, 1]} : vector<8x8xf32> to vector<8x1xf32>
    %43 = vector.extract_strided_slice %24 {offsets = [3, 0], sizes = [1, 8], strides = [1, 1]} : vector<8x8xf32> to vector<1x8xf32>
    %44 = vector.broadcast %42 : vector<8x1xf32> to vector<8x8xf32>
    %45 = vector.broadcast %43 : vector<1x8xf32> to vector<8x8xf32>
    %46 = arith.mulf %44, %45 : vector<8x8xf32>
    %47 = arith.addf %41, %46 : vector<8x8xf32>
    %48 = vector.extract_strided_slice %24 {offsets = [0, 4], sizes = [8, 1], strides = [1, 1]} : vector<8x8xf32> to vector<8x1xf32>
    %49 = vector.extract_strided_slice %24 {offsets = [4, 0], sizes = [1, 8], strides = [1, 1]} : vector<8x8xf32> to vector<1x8xf32>
    %50 = vector.broadcast %48 : vector<8x1xf32> to vector<8x8xf32>
    %51 = vector.broadcast %49 : vector<1x8xf32> to vector<8x8xf32>
    %52 = arith.mulf %50, %51 : vector<8x8xf32>
    %53 = arith.addf %47, %52 : vector<8x8xf32>
    %54 = vector.extract_strided_slice %24 {offsets = [0, 5], sizes = [8, 1], strides = [1, 1]} : vector<8x8xf32> to vector<8x1xf32>
    %55 = vector.extract_strided_slice %24 {offsets = [5, 0], sizes = [1, 8], strides = [1, 1]} : vector<8x8xf32> to vector<1x8xf32>
    %56 = vector.broadcast %54 : vector<8x1xf32> to vector<8x8xf32>
    %57 = vector.broadcast %55 : vector<1x8xf32> to vector<8x8xf32>
    %58 = arith.mulf %56, %57 : vector<8x8xf32>
    %59 = arith.addf %53, %58 : vector<8x8xf32>
    %60 = vector.extract_strided_slice %59 {offsets = [0, 0], sizes = [8, 1], strides = [1, 1]} : vector<8x8xf32> to vector<8x1xf32>
    %61 = vector.extract_strided_slice %59 {offsets = [0, 0], sizes = [1, 8], strides = [1, 1]} : vector<8x8xf32> to vector<1x8xf32>
    %62 = vector.broadcast %60 : vector<8x1xf32> to vector<8x8xf32>
    %63 = vector.broadcast %61 : vector<1x8xf32> to vector<8x8xf32>
    %64 = arith.mulf %62, %63 : vector<8x8xf32>
    %65 = vector.extract_strided_slice %59 {offsets = [0, 1], sizes = [8, 1], strides = [1, 1]} : vector<8x8xf32> to vector<8x1xf32>
    %66 = vector.extract_strided_slice %59 {offsets = [1, 0], sizes = [1, 8], strides = [1, 1]} : vector<8x8xf32> to vector<1x8xf32>
    %67 = vector.broadcast %65 : vector<8x1xf32> to vector<8x8xf32>
    %68 = vector.broadcast %66 : vector<1x8xf32> to vector<8x8xf32>
    %69 = arith.mulf %67, %68 : vector<8x8xf32>
    %70 = arith.addf %64, %69 : vector<8x8xf32>
    %71 = vector.extract_strided_slice %59 {offsets = [0, 2], sizes = [8, 1], strides = [1, 1]} : vector<8x8xf32> to vector<8x1xf32>
    %72 = vector.extract_strided_slice %59 {offsets = [2, 0], sizes = [1, 8], strides = [1, 1]} : vector<8x8xf32> to vector<1x8xf32>
    %73 = vector.broadcast %71 : vector<8x1xf32> to vector<8x8xf32>
    %74 = vector.broadcast %72 : vector<1x8xf32> to vector<8x8xf32>
    %75 = arith.mulf %73, %74 : vector<8x8xf32>
    %76 = arith.addf %70, %75 : vector<8x8xf32>
    %77 = vector.extract_strided_slice %59 {offsets = [0, 3], sizes = [8, 1], strides = [1, 1]} : vector<8x8xf32> to vector<8x1xf32>
    %78 = vector.extract_strided_slice %59 {offsets = [3, 0], sizes = [1, 8], strides = [1, 1]} : vector<8x8xf32> to vector<1x8xf32>
    %79 = vector.broadcast %77 : vector<8x1xf32> to vector<8x8xf32>
    %80 = vector.broadcast %78 : vector<1x8xf32> to vector<8x8xf32>
    %81 = arith.mulf %79, %80 : vector<8x8xf32>
    %82 = arith.addf %76, %81 : vector<8x8xf32>
    %83 = vector.extract_strided_slice %59 {offsets = [0, 4], sizes = [8, 1], strides = [1, 1]} : vector<8x8xf32> to vector<8x1xf32>
    %84 = vector.extract_strided_slice %59 {offsets = [4, 0], sizes = [1, 8], strides = [1, 1]} : vector<8x8xf32> to vector<1x8xf32>
    %85 = vector.broadcast %83 : vector<8x1xf32> to vector<8x8xf32>
    %86 = vector.broadcast %84 : vector<1x8xf32> to vector<8x8xf32>
    %87 = arith.mulf %85, %86 : vector<8x8xf32>
    %88 = arith.addf %82, %87 : vector<8x8xf32>
    %89 = vector.extract_strided_slice %59 {offsets = [0, 5], sizes = [8, 1], strides = [1, 1]} : vector<8x8xf32> to vector<8x1xf32>
    %90 = vector.extract_strided_slice %59 {offsets = [5, 0], sizes = [1, 8], strides = [1, 1]} : vector<8x8xf32> to vector<1x8xf32>
    %91 = vector.broadcast %89 : vector<8x1xf32> to vector<8x8xf32>
    %92 = vector.broadcast %90 : vector<1x8xf32> to vector<8x8xf32>
    %93 = arith.mulf %91, %92 : vector<8x8xf32>
    %94 = arith.addf %88, %93 : vector<8x8xf32>
    %95 = vector.extract_strided_slice %94 {offsets = [0, 0], sizes = [8, 1], strides = [1, 1]} : vector<8x8xf32> to vector<8x1xf32>
    %96 = vector.extract_strided_slice %94 {offsets = [0, 0], sizes = [1, 8], strides = [1, 1]} : vector<8x8xf32> to vector<1x8xf32>
    %97 = vector.broadcast %95 : vector<8x1xf32> to vector<8x8xf32>
    %98 = vector.broadcast %96 : vector<1x8xf32> to vector<8x8xf32>
    %99 = arith.mulf %97, %98 : vector<8x8xf32>
    %100 = vector.extract_strided_slice %94 {offsets = [0, 1], sizes = [8, 1], strides = [1, 1]} : vector<8x8xf32> to vector<8x1xf32>
    %101 = vector.extract_strided_slice %94 {offsets = [1, 0], sizes = [1, 8], strides = [1, 1]} : vector<8x8xf32> to vector<1x8xf32>
    %102 = vector.broadcast %100 : vector<8x1xf32> to vector<8x8xf32>
    %103 = vector.broadcast %101 : vector<1x8xf32> to vector<8x8xf32>
    %104 = arith.mulf %102, %103 : vector<8x8xf32>
    %105 = arith.addf %99, %104 : vector<8x8xf32>
    %106 = vector.extract_strided_slice %94 {offsets = [0, 2], sizes = [8, 1], strides = [1, 1]} : vector<8x8xf32> to vector<8x1xf32>
    %107 = vector.extract_strided_slice %94 {offsets = [2, 0], sizes = [1, 8], strides = [1, 1]} : vector<8x8xf32> to vector<1x8xf32>
    %108 = vector.broadcast %106 : vector<8x1xf32> to vector<8x8xf32>
    %109 = vector.broadcast %107 : vector<1x8xf32> to vector<8x8xf32>
    %110 = arith.mulf %108, %109 : vector<8x8xf32>
    %111 = arith.addf %105, %110 : vector<8x8xf32>
    %112 = vector.extract_strided_slice %94 {offsets = [0, 3], sizes = [8, 1], strides = [1, 1]} : vector<8x8xf32> to vector<8x1xf32>
    %113 = vector.extract_strided_slice %94 {offsets = [3, 0], sizes = [1, 8], strides = [1, 1]} : vector<8x8xf32> to vector<1x8xf32>
    %114 = vector.broadcast %112 : vector<8x1xf32> to vector<8x8xf32>
    %115 = vector.broadcast %113 : vector<1x8xf32> to vector<8x8xf32>
    %116 = arith.mulf %114, %115 : vector<8x8xf32>
    %117 = arith.addf %111, %116 : vector<8x8xf32>
    %118 = vector.extract_strided_slice %94 {offsets = [0, 4], sizes = [8, 1], strides = [1, 1]} : vector<8x8xf32> to vector<8x1xf32>
    %119 = vector.extract_strided_slice %94 {offsets = [4, 0], sizes = [1, 8], strides = [1, 1]} : vector<8x8xf32> to vector<1x8xf32>
    %120 = vector.broadcast %118 : vector<8x1xf32> to vector<8x8xf32>
    %121 = vector.broadcast %119 : vector<1x8xf32> to vector<8x8xf32>
    %122 = arith.mulf %120, %121 : vector<8x8xf32>
    %123 = arith.addf %117, %122 : vector<8x8xf32>
    %124 = vector.extract_strided_slice %94 {offsets = [0, 5], sizes = [8, 1], strides = [1, 1]} : vector<8x8xf32> to vector<8x1xf32>
    %125 = vector.extract_strided_slice %94 {offsets = [5, 0], sizes = [1, 8], strides = [1, 1]} : vector<8x8xf32> to vector<1x8xf32>
    %126 = vector.broadcast %124 : vector<8x1xf32> to vector<8x8xf32>
    %127 = vector.broadcast %125 : vector<1x8xf32> to vector<8x8xf32>
    %128 = arith.mulf %126, %127 : vector<8x8xf32>
    %129 = arith.addf %123, %128 : vector<8x8xf32>
    %130 = vector.extract_strided_slice %129 {offsets = [0, 0], sizes = [8, 1], strides = [1, 1]} : vector<8x8xf32> to vector<8x1xf32>
    %131 = vector.extract_strided_slice %129 {offsets = [0, 0], sizes = [1, 8], strides = [1, 1]} : vector<8x8xf32> to vector<1x8xf32>
    %132 = vector.broadcast %130 : vector<8x1xf32> to vector<8x8xf32>
    %133 = vector.broadcast %131 : vector<1x8xf32> to vector<8x8xf32>
    %134 = arith.mulf %132, %133 : vector<8x8xf32>
    %135 = vector.extract_strided_slice %129 {offsets = [0, 1], sizes = [8, 1], strides = [1, 1]} : vector<8x8xf32> to vector<8x1xf32>
    %136 = vector.extract_strided_slice %129 {offsets = [1, 0], sizes = [1, 8], strides = [1, 1]} : vector<8x8xf32> to vector<1x8xf32>
    %137 = vector.broadcast %135 : vector<8x1xf32> to vector<8x8xf32>
    %138 = vector.broadcast %136 : vector<1x8xf32> to vector<8x8xf32>
    %139 = arith.mulf %137, %138 : vector<8x8xf32>
    %140 = arith.addf %134, %139 : vector<8x8xf32>
    %141 = vector.extract_strided_slice %129 {offsets = [0, 2], sizes = [8, 1], strides = [1, 1]} : vector<8x8xf32> to vector<8x1xf32>
    %142 = vector.extract_strided_slice %129 {offsets = [2, 0], sizes = [1, 8], strides = [1, 1]} : vector<8x8xf32> to vector<1x8xf32>
    %143 = vector.broadcast %141 : vector<8x1xf32> to vector<8x8xf32>
    %144 = vector.broadcast %142 : vector<1x8xf32> to vector<8x8xf32>
    %145 = arith.mulf %143, %144 : vector<8x8xf32>
    %146 = arith.addf %140, %145 : vector<8x8xf32>
    %147 = vector.extract_strided_slice %129 {offsets = [0, 3], sizes = [8, 1], strides = [1, 1]} : vector<8x8xf32> to vector<8x1xf32>
    %148 = vector.extract_strided_slice %129 {offsets = [3, 0], sizes = [1, 8], strides = [1, 1]} : vector<8x8xf32> to vector<1x8xf32>
    %149 = vector.broadcast %147 : vector<8x1xf32> to vector<8x8xf32>
    %150 = vector.broadcast %148 : vector<1x8xf32> to vector<8x8xf32>
    %151 = arith.mulf %149, %150 : vector<8x8xf32>
    %152 = arith.addf %146, %151 : vector<8x8xf32>
    %153 = vector.extract_strided_slice %129 {offsets = [0, 4], sizes = [8, 1], strides = [1, 1]} : vector<8x8xf32> to vector<8x1xf32>
    %154 = vector.extract_strided_slice %129 {offsets = [4, 0], sizes = [1, 8], strides = [1, 1]} : vector<8x8xf32> to vector<1x8xf32>
    %155 = vector.broadcast %153 : vector<8x1xf32> to vector<8x8xf32>
    %156 = vector.broadcast %154 : vector<1x8xf32> to vector<8x8xf32>
    %157 = arith.mulf %155, %156 : vector<8x8xf32>
    %158 = arith.addf %152, %157 : vector<8x8xf32>
    %159 = vector.extract_strided_slice %129 {offsets = [0, 5], sizes = [8, 1], strides = [1, 1]} : vector<8x8xf32> to vector<8x1xf32>
    %160 = vector.extract_strided_slice %129 {offsets = [5, 0], sizes = [1, 8], strides = [1, 1]} : vector<8x8xf32> to vector<1x8xf32>
    %161 = vector.broadcast %159 : vector<8x1xf32> to vector<8x8xf32>
    %162 = vector.broadcast %160 : vector<1x8xf32> to vector<8x8xf32>
    %163 = arith.mulf %161, %162 : vector<8x8xf32>
    %164 = arith.addf %158, %163 : vector<8x8xf32>
    %165 = vector.extract_strided_slice %164 {offsets = [0, 0], sizes = [8, 1], strides = [1, 1]} : vector<8x8xf32> to vector<8x1xf32>
    %166 = vector.extract_strided_slice %164 {offsets = [0, 0], sizes = [1, 8], strides = [1, 1]} : vector<8x8xf32> to vector<1x8xf32>
    %167 = vector.broadcast %165 : vector<8x1xf32> to vector<8x8xf32>
    %168 = vector.broadcast %166 : vector<1x8xf32> to vector<8x8xf32>
    %169 = arith.mulf %167, %168 : vector<8x8xf32>
    %170 = vector.extract_strided_slice %164 {offsets = [0, 1], sizes = [8, 1], strides = [1, 1]} : vector<8x8xf32> to vector<8x1xf32>
    %171 = vector.extract_strided_slice %164 {offsets = [1, 0], sizes = [1, 8], strides = [1, 1]} : vector<8x8xf32> to vector<1x8xf32>
    %172 = vector.broadcast %170 : vector<8x1xf32> to vector<8x8xf32>
    %173 = vector.broadcast %171 : vector<1x8xf32> to vector<8x8xf32>
    %174 = arith.mulf %172, %173 : vector<8x8xf32>
    %175 = arith.addf %169, %174 : vector<8x8xf32>
    %176 = vector.extract_strided_slice %164 {offsets = [0, 2], sizes = [8, 1], strides = [1, 1]} : vector<8x8xf32> to vector<8x1xf32>
    %177 = vector.extract_strided_slice %164 {offsets = [2, 0], sizes = [1, 8], strides = [1, 1]} : vector<8x8xf32> to vector<1x8xf32>
    %178 = vector.broadcast %176 : vector<8x1xf32> to vector<8x8xf32>
    %179 = vector.broadcast %177 : vector<1x8xf32> to vector<8x8xf32>
    %180 = arith.mulf %178, %179 : vector<8x8xf32>
    %181 = arith.addf %175, %180 : vector<8x8xf32>
    %182 = vector.extract_strided_slice %164 {offsets = [0, 3], sizes = [8, 1], strides = [1, 1]} : vector<8x8xf32> to vector<8x1xf32>
    %183 = vector.extract_strided_slice %164 {offsets = [3, 0], sizes = [1, 8], strides = [1, 1]} : vector<8x8xf32> to vector<1x8xf32>
    %184 = vector.broadcast %182 : vector<8x1xf32> to vector<8x8xf32>
    %185 = vector.broadcast %183 : vector<1x8xf32> to vector<8x8xf32>
    %186 = arith.mulf %184, %185 : vector<8x8xf32>
    %187 = arith.addf %181, %186 : vector<8x8xf32>
    %188 = vector.extract_strided_slice %164 {offsets = [0, 4], sizes = [8, 1], strides = [1, 1]} : vector<8x8xf32> to vector<8x1xf32>
    %189 = vector.extract_strided_slice %164 {offsets = [4, 0], sizes = [1, 8], strides = [1, 1]} : vector<8x8xf32> to vector<1x8xf32>
    %190 = vector.broadcast %188 : vector<8x1xf32> to vector<8x8xf32>
    %191 = vector.broadcast %189 : vector<1x8xf32> to vector<8x8xf32>
    %192 = arith.mulf %190, %191 : vector<8x8xf32>
    %193 = arith.addf %187, %192 : vector<8x8xf32>
    %194 = vector.extract_strided_slice %164 {offsets = [0, 5], sizes = [8, 1], strides = [1, 1]} : vector<8x8xf32> to vector<8x1xf32>
    %195 = vector.extract_strided_slice %164 {offsets = [5, 0], sizes = [1, 8], strides = [1, 1]} : vector<8x8xf32> to vector<1x8xf32>
    %196 = vector.broadcast %194 : vector<8x1xf32> to vector<8x8xf32>
    %197 = vector.broadcast %195 : vector<1x8xf32> to vector<8x8xf32>
    %198 = arith.mulf %196, %197 : vector<8x8xf32>
    %199 = arith.addf %193, %198 : vector<8x8xf32>
    %200 = vector.extract_strided_slice %94 {offsets = [0, 0], sizes = [8, 1], strides = [1, 1]} : vector<8x8xf32> to vector<8x1xf32>
    %201 = vector.extract_strided_slice %199 {offsets = [0, 0], sizes = [1, 8], strides = [1, 1]} : vector<8x8xf32> to vector<1x8xf32>
    %202 = vector.broadcast %200 : vector<8x1xf32> to vector<8x8xf32>
    %203 = vector.broadcast %201 : vector<1x8xf32> to vector<8x8xf32>
    %204 = arith.mulf %202, %203 : vector<8x8xf32>
    %205 = vector.extract_strided_slice %94 {offsets = [0, 1], sizes = [8, 1], strides = [1, 1]} : vector<8x8xf32> to vector<8x1xf32>
    %206 = vector.extract_strided_slice %199 {offsets = [1, 0], sizes = [1, 8], strides = [1, 1]} : vector<8x8xf32> to vector<1x8xf32>
    %207 = vector.broadcast %205 : vector<8x1xf32> to vector<8x8xf32>
    %208 = vector.broadcast %206 : vector<1x8xf32> to vector<8x8xf32>
    %209 = arith.mulf %207, %208 : vector<8x8xf32>
    %210 = arith.addf %204, %209 : vector<8x8xf32>
    %211 = vector.extract_strided_slice %94 {offsets = [0, 2], sizes = [8, 1], strides = [1, 1]} : vector<8x8xf32> to vector<8x1xf32>
    %212 = vector.extract_strided_slice %199 {offsets = [2, 0], sizes = [1, 8], strides = [1, 1]} : vector<8x8xf32> to vector<1x8xf32>
    %213 = vector.broadcast %211 : vector<8x1xf32> to vector<8x8xf32>
    %214 = vector.broadcast %212 : vector<1x8xf32> to vector<8x8xf32>
    %215 = arith.mulf %213, %214 : vector<8x8xf32>
    %216 = arith.addf %210, %215 : vector<8x8xf32>
    %217 = vector.extract_strided_slice %94 {offsets = [0, 3], sizes = [8, 1], strides = [1, 1]} : vector<8x8xf32> to vector<8x1xf32>
    %218 = vector.extract_strided_slice %199 {offsets = [3, 0], sizes = [1, 8], strides = [1, 1]} : vector<8x8xf32> to vector<1x8xf32>
    %219 = vector.broadcast %217 : vector<8x1xf32> to vector<8x8xf32>
    %220 = vector.broadcast %218 : vector<1x8xf32> to vector<8x8xf32>
    %221 = arith.mulf %219, %220 : vector<8x8xf32>
    %222 = arith.addf %216, %221 : vector<8x8xf32>
    %223 = vector.extract_strided_slice %94 {offsets = [0, 4], sizes = [8, 1], strides = [1, 1]} : vector<8x8xf32> to vector<8x1xf32>
    %224 = vector.extract_strided_slice %199 {offsets = [4, 0], sizes = [1, 8], strides = [1, 1]} : vector<8x8xf32> to vector<1x8xf32>
    %225 = vector.broadcast %223 : vector<8x1xf32> to vector<8x8xf32>
    %226 = vector.broadcast %224 : vector<1x8xf32> to vector<8x8xf32>
    %227 = arith.mulf %225, %226 : vector<8x8xf32>
    %228 = arith.addf %222, %227 : vector<8x8xf32>
    %229 = vector.extract_strided_slice %94 {offsets = [0, 5], sizes = [8, 1], strides = [1, 1]} : vector<8x8xf32> to vector<8x1xf32>
    %230 = vector.extract_strided_slice %199 {offsets = [5, 0], sizes = [1, 8], strides = [1, 1]} : vector<8x8xf32> to vector<1x8xf32>
    %231 = vector.broadcast %229 : vector<8x1xf32> to vector<8x8xf32>
    %232 = vector.broadcast %230 : vector<1x8xf32> to vector<8x8xf32>
    %233 = arith.mulf %231, %232 : vector<8x8xf32>
    %234 = arith.addf %228, %233 : vector<8x8xf32>
    %235 = vector.extract_strided_slice %199 {offsets = [0, 0], sizes = [8, 1], strides = [1, 1]} : vector<8x8xf32> to vector<8x1xf32>
    %236 = vector.extract_strided_slice %199 {offsets = [0, 0], sizes = [1, 8], strides = [1, 1]} : vector<8x8xf32> to vector<1x8xf32>
    %237 = vector.broadcast %235 : vector<8x1xf32> to vector<8x8xf32>
    %238 = vector.broadcast %236 : vector<1x8xf32> to vector<8x8xf32>
    %239 = arith.mulf %237, %238 : vector<8x8xf32>
    %240 = vector.extract_strided_slice %199 {offsets = [0, 1], sizes = [8, 1], strides = [1, 1]} : vector<8x8xf32> to vector<8x1xf32>
    %241 = vector.extract_strided_slice %199 {offsets = [1, 0], sizes = [1, 8], strides = [1, 1]} : vector<8x8xf32> to vector<1x8xf32>
    %242 = vector.broadcast %240 : vector<8x1xf32> to vector<8x8xf32>
    %243 = vector.broadcast %241 : vector<1x8xf32> to vector<8x8xf32>
    %244 = arith.mulf %242, %243 : vector<8x8xf32>
    %245 = arith.addf %239, %244 : vector<8x8xf32>
    %246 = vector.extract_strided_slice %199 {offsets = [0, 2], sizes = [8, 1], strides = [1, 1]} : vector<8x8xf32> to vector<8x1xf32>
    %247 = vector.extract_strided_slice %199 {offsets = [2, 0], sizes = [1, 8], strides = [1, 1]} : vector<8x8xf32> to vector<1x8xf32>
    %248 = vector.broadcast %246 : vector<8x1xf32> to vector<8x8xf32>
    %249 = vector.broadcast %247 : vector<1x8xf32> to vector<8x8xf32>
    %250 = arith.mulf %248, %249 : vector<8x8xf32>
    %251 = arith.addf %245, %250 : vector<8x8xf32>
    %252 = vector.extract_strided_slice %199 {offsets = [0, 3], sizes = [8, 1], strides = [1, 1]} : vector<8x8xf32> to vector<8x1xf32>
    %253 = vector.extract_strided_slice %199 {offsets = [3, 0], sizes = [1, 8], strides = [1, 1]} : vector<8x8xf32> to vector<1x8xf32>
    %254 = vector.broadcast %252 : vector<8x1xf32> to vector<8x8xf32>
    %255 = vector.broadcast %253 : vector<1x8xf32> to vector<8x8xf32>
    %256 = arith.mulf %254, %255 : vector<8x8xf32>
    %257 = arith.addf %251, %256 : vector<8x8xf32>
    %258 = vector.extract_strided_slice %199 {offsets = [0, 4], sizes = [8, 1], strides = [1, 1]} : vector<8x8xf32> to vector<8x1xf32>
    %259 = vector.extract_strided_slice %199 {offsets = [4, 0], sizes = [1, 8], strides = [1, 1]} : vector<8x8xf32> to vector<1x8xf32>
    %260 = vector.broadcast %258 : vector<8x1xf32> to vector<8x8xf32>
    %261 = vector.broadcast %259 : vector<1x8xf32> to vector<8x8xf32>
    %262 = arith.mulf %260, %261 : vector<8x8xf32>
    %263 = arith.addf %257, %262 : vector<8x8xf32>
    %264 = vector.extract_strided_slice %199 {offsets = [0, 5], sizes = [8, 1], strides = [1, 1]} : vector<8x8xf32> to vector<8x1xf32>
    %265 = vector.extract_strided_slice %199 {offsets = [5, 0], sizes = [1, 8], strides = [1, 1]} : vector<8x8xf32> to vector<1x8xf32>
    %266 = vector.broadcast %264 : vector<8x1xf32> to vector<8x8xf32>
    %267 = vector.broadcast %265 : vector<1x8xf32> to vector<8x8xf32>
    %268 = arith.mulf %266, %267 : vector<8x8xf32>
    %269 = arith.addf %263, %268 : vector<8x8xf32>
    %270 = vector.extract_strided_slice %234 {offsets = [0, 0], sizes = [8, 1], strides = [1, 1]} : vector<8x8xf32> to vector<8x1xf32>
    %271 = vector.extract_strided_slice %269 {offsets = [0, 0], sizes = [1, 8], strides = [1, 1]} : vector<8x8xf32> to vector<1x8xf32>
    %272 = vector.broadcast %270 : vector<8x1xf32> to vector<8x8xf32>
    %273 = vector.broadcast %271 : vector<1x8xf32> to vector<8x8xf32>
    %274 = arith.mulf %272, %273 : vector<8x8xf32>
    %275 = vector.extract_strided_slice %234 {offsets = [0, 1], sizes = [8, 1], strides = [1, 1]} : vector<8x8xf32> to vector<8x1xf32>
    %276 = vector.extract_strided_slice %269 {offsets = [1, 0], sizes = [1, 8], strides = [1, 1]} : vector<8x8xf32> to vector<1x8xf32>
    %277 = vector.broadcast %275 : vector<8x1xf32> to vector<8x8xf32>
    %278 = vector.broadcast %276 : vector<1x8xf32> to vector<8x8xf32>
    %279 = arith.mulf %277, %278 : vector<8x8xf32>
    %280 = arith.addf %274, %279 : vector<8x8xf32>
    %281 = vector.extract_strided_slice %234 {offsets = [0, 2], sizes = [8, 1], strides = [1, 1]} : vector<8x8xf32> to vector<8x1xf32>
    %282 = vector.extract_strided_slice %269 {offsets = [2, 0], sizes = [1, 8], strides = [1, 1]} : vector<8x8xf32> to vector<1x8xf32>
    %283 = vector.broadcast %281 : vector<8x1xf32> to vector<8x8xf32>
    %284 = vector.broadcast %282 : vector<1x8xf32> to vector<8x8xf32>
    %285 = arith.mulf %283, %284 : vector<8x8xf32>
    %286 = arith.addf %280, %285 : vector<8x8xf32>
    %287 = vector.extract_strided_slice %234 {offsets = [0, 3], sizes = [8, 1], strides = [1, 1]} : vector<8x8xf32> to vector<8x1xf32>
    %288 = vector.extract_strided_slice %269 {offsets = [3, 0], sizes = [1, 8], strides = [1, 1]} : vector<8x8xf32> to vector<1x8xf32>
    %289 = vector.broadcast %287 : vector<8x1xf32> to vector<8x8xf32>
    %290 = vector.broadcast %288 : vector<1x8xf32> to vector<8x8xf32>
    %291 = arith.mulf %289, %290 : vector<8x8xf32>
    %292 = arith.addf %286, %291 : vector<8x8xf32>
    %293 = vector.extract_strided_slice %234 {offsets = [0, 4], sizes = [8, 1], strides = [1, 1]} : vector<8x8xf32> to vector<8x1xf32>
    %294 = vector.extract_strided_slice %269 {offsets = [4, 0], sizes = [1, 8], strides = [1, 1]} : vector<8x8xf32> to vector<1x8xf32>
    %295 = vector.broadcast %293 : vector<8x1xf32> to vector<8x8xf32>
    %296 = vector.broadcast %294 : vector<1x8xf32> to vector<8x8xf32>
    %297 = arith.mulf %295, %296 : vector<8x8xf32>
    %298 = arith.addf %292, %297 : vector<8x8xf32>
    %299 = vector.extract_strided_slice %234 {offsets = [0, 5], sizes = [8, 1], strides = [1, 1]} : vector<8x8xf32> to vector<8x1xf32>
    %300 = vector.extract_strided_slice %269 {offsets = [5, 0], sizes = [1, 8], strides = [1, 1]} : vector<8x8xf32> to vector<1x8xf32>
    %301 = vector.broadcast %299 : vector<8x1xf32> to vector<8x8xf32>
    %302 = vector.broadcast %300 : vector<1x8xf32> to vector<8x8xf32>
    %303 = arith.mulf %301, %302 : vector<8x8xf32>
    %304 = arith.addf %298, %303 : vector<8x8xf32>
    %305 = vector.extract_strided_slice %304 {offsets = [0, 0], sizes = [5, 5], strides = [1, 1]} : vector<8x8xf32> to vector<5x5xf32>
    %306 = vector.extract_strided_slice %304 {offsets = [5, 0], sizes = [1, 5], strides = [1, 1]} : vector<8x8xf32> to vector<1x5xf32>
    %307 = vector.extract_strided_slice %0 {offsets = [0, 0], sizes = [10, 1], strides = [1, 1]} : vector<10x5xf32> to vector<10x1xf32>
    %308 = vector.extract_strided_slice %305 {offsets = [0, 0], sizes = [1, 5], strides = [1, 1]} : vector<5x5xf32> to vector<1x5xf32>
    %309 = vector.broadcast %307 : vector<10x1xf32> to vector<10x5xf32>
    %310 = vector.broadcast %308 : vector<1x5xf32> to vector<10x5xf32>
    %311 = arith.mulf %309, %310 : vector<10x5xf32>
    %312 = vector.extract_strided_slice %0 {offsets = [0, 1], sizes = [10, 1], strides = [1, 1]} : vector<10x5xf32> to vector<10x1xf32>
    %313 = vector.extract_strided_slice %305 {offsets = [1, 0], sizes = [1, 5], strides = [1, 1]} : vector<5x5xf32> to vector<1x5xf32>
    %314 = vector.broadcast %312 : vector<10x1xf32> to vector<10x5xf32>
    %315 = vector.broadcast %313 : vector<1x5xf32> to vector<10x5xf32>
    %316 = arith.mulf %314, %315 : vector<10x5xf32>
    %317 = arith.addf %311, %316 : vector<10x5xf32>
    %318 = vector.extract_strided_slice %0 {offsets = [0, 2], sizes = [10, 1], strides = [1, 1]} : vector<10x5xf32> to vector<10x1xf32>
    %319 = vector.extract_strided_slice %305 {offsets = [2, 0], sizes = [1, 5], strides = [1, 1]} : vector<5x5xf32> to vector<1x5xf32>
    %320 = vector.broadcast %318 : vector<10x1xf32> to vector<10x5xf32>
    %321 = vector.broadcast %319 : vector<1x5xf32> to vector<10x5xf32>
    %322 = arith.mulf %320, %321 : vector<10x5xf32>
    %323 = arith.addf %317, %322 : vector<10x5xf32>
    %324 = vector.extract_strided_slice %0 {offsets = [0, 3], sizes = [10, 1], strides = [1, 1]} : vector<10x5xf32> to vector<10x1xf32>
    %325 = vector.extract_strided_slice %305 {offsets = [3, 0], sizes = [1, 5], strides = [1, 1]} : vector<5x5xf32> to vector<1x5xf32>
    %326 = vector.broadcast %324 : vector<10x1xf32> to vector<10x5xf32>
    %327 = vector.broadcast %325 : vector<1x5xf32> to vector<10x5xf32>
    %328 = arith.mulf %326, %327 : vector<10x5xf32>
    %329 = arith.addf %323, %328 : vector<10x5xf32>
    %330 = vector.extract_strided_slice %0 {offsets = [0, 4], sizes = [10, 1], strides = [1, 1]} : vector<10x5xf32> to vector<10x1xf32>
    %331 = vector.extract_strided_slice %305 {offsets = [4, 0], sizes = [1, 5], strides = [1, 1]} : vector<5x5xf32> to vector<1x5xf32>
    %332 = vector.broadcast %330 : vector<10x1xf32> to vector<10x5xf32>
    %333 = vector.broadcast %331 : vector<1x5xf32> to vector<10x5xf32>
    %334 = arith.mulf %332, %333 : vector<10x5xf32>
    %335 = arith.addf %329, %334 : vector<10x5xf32>
    %336 = vector.broadcast %306 : vector<1x5xf32> to vector<10x5xf32>
    %337 = arith.addf %335, %336 : vector<10x5xf32>
    %338 = arith.mulf %337, %337 : vector<10x5xf32>
    %339 = vector.shape_cast %338 : vector<10x5xf32> to vector<1x10x5xf32>
    %cst_18 = arith.constant dense<0.000000e+00> : vector<1xf32>
    %340 = vector.multi_reduction <add>, %339, %cst_18 [1, 2] : vector<1x10x5xf32> to vector<1xf32>
    %341 = vector.shape_cast %340 : vector<1xf32> to vector<1x1x1xf32>
    %342 = vector.extract %341[0, 0, 0] : f32 from vector<1x1x1xf32>
    %c0_19 = arith.constant 0 : index
    %c0_20 = arith.constant 0 : index
    %343 = memref.load %arg5[%c0_19, %c0_20] : memref<1x1xf32, #tpu.memory_space<smem>>
    memref.store %342, %arg5[%c0_19, %c0_20] : memref<1x1xf32, #tpu.memory_space<smem>>
    return
  }
}

</mosaic_0001>

<llo_original>
// kernel: simulation_forward.1
$region0: #{simulation_forward.1}
  #allocation0 [shape = 'u32[]', space=smem, size = 0x4, offset = 0x4, fixed_abs, tag = 'smem constant byte address 0x4 - core index']
  #allocation1 [shape = 'u32[144,128]{1,0:T(1,128)}', space=vmem, size = 0x12000, scoped, tag = 'internal scratch']
  #allocation2 [shape = 'f32[8,8]{1,0:T(8,128)}', space=vmem, size = 0x1000, scoped, tag = 'scratch operand']
  #allocation3 [shape = 'f32[1,1]{1,0:T(1,128)S(1)}', space=vmem, size = 0x200, scoped, tag = 'scoped memory for simulation_forward.1']
  %s0 = inlined_call_operand.vmem [shape: f32[10,5], index: 0, kind: input, shape index: {}]
  %s1 = inlined_call_operand.vmem [shape: f32[5,5], index: 1, kind: input, shape index: {}]
  %s2 = inlined_call_operand.vmem [shape: f32[5,1], index: 2, kind: input, shape index: {}]
  %s3 = inlined_call_operand.vmem [shape: f32[1,5], index: 3, kind: input, shape index: {}]
  %s4 = inlined_call_operand.<no memory space> [shape: f32[1,1], index: 4, kind: input, shape index: {}]
  %s5 = inlined_call_operand.hbm [shape: f32[1,1], index: 5, kind: output, shape index: {}]
  %s6 = sld [smem:[#allocation0]]
  $region30: #{simulation_forward.1} parent=0
    _
  %s8 = ssub.s32 1, %s6
  %s9 = scalar_select 0, %s8, %s6
  %v10 = vstv %s4
  %11 = vst [vmem:[#allocation3] sm:$0x1] %v10
  $region1: #{simulation_forward.1} parent=0
    #allocation4 [shape = 'u8[512]{0}', space=smem, size = 0x200, scoped, tag = 'output window, operand 0, single buffered']
    #allocation5 [shape = 's32[1]{0}', space=sflag, size = 0x4, scoped, tag = 'scoped memory for simulation_forward.1']
    %12 = vsyncpa [#allocation5], 0
    // Predicated region
    $region2: #{simulation_forward.1} parent=1 // pred_check
      _
    $region3: #{simulation_forward.1} parent=1 // pred_check_branch
      %14 = sbr.rel (0) target = $region5
    $region4: #{simulation_forward.1} parent=1 // pred_region
      _
    $region5: #{simulation_forward.1} parent=1 // pred_fallthru
      _
    // Predicated region
    $region6: #{simulation_forward.1} parent=1 // pred_check
      _
    $region7: #{simulation_forward.1} parent=1 // pred_check_branch
      %16 = sbr.rel (0) target = $region9
    $region8: #{simulation_forward.1} parent=1 // pred_region
      _
    $region9: #{simulation_forward.1} parent=1 // pred_fallthru
      _
    // Predicated region
    $region10: #{simulation_forward.1} parent=1 // pred_check
      _
    $region11: #{simulation_forward.1} parent=1 // pred_check_branch
      %18 = sbr.rel (0) target = $region13
    $region12: #{simulation_forward.1} parent=1 // pred_region
      _
    $region13: #{simulation_forward.1} parent=1 // pred_fallthru
      _
    // Predicated region
    $region14: #{simulation_forward.1} parent=1 // pred_check
      _
    $region15: #{simulation_forward.1} parent=1 // pred_check_branch
      %20 = sbr.rel (0) target = $region17
    $region16: #{simulation_forward.1} parent=1 // pred_region
      _
    $region17: #{simulation_forward.1} parent=1 // pred_fallthru
      _
    // Predicated region
    $region18: #{simulation_forward.1} parent=1 // pred_check
      _
    $region19: #{simulation_forward.1} parent=1 // pred_check_branch
      %22 = sbr.rel (0) target = $region21
    $region20: #{simulation_forward.1} parent=1 // pred_region
      _
    $region21: #{simulation_forward.1} parent=1 // pred_fallthru
      _
    %v23 = vld [vmem:[%s0] sm:$0xff]
    %v24 = vld [vmem:[%s0 + $0x8] sm:$0x3]
    %v25 = vld [vmem:[%s1] sm:$0x1f]
    %v26 = vld [vmem:[%s2] sm:$0x1f]
    %v27 = vld [vmem:[%s3] sm:$0x1]
    %v28 = vld [vmem:[#allocation3] sm:$0x1]
    %30 = vset.pattern.permute.xlu0 0
    %31 = vperm.xlu0 %30, %v26
    %v32 = vpop.permute.xlu0 %31
    %v35 = vlaneseq
    %v36 = vshrl.u32 %v35, 7
    %v37 = vsub.s32 0, %v36
    %v38 = vrot.slane %v27, %v37
    %v40 = vmul.f32 %v32, %v38
    %v41 = vadd.f32 %v25, %v40
    %43 = vset.pattern.permute.xlu0 0
    %44 = vperm.xlu0 %43, %v28
    %v45 = vpop.permute.xlu0 %44
    %v47 = vlaneseq
    %v48 = vshrl.u32 %v47, 7
    %v49 = vsub.s32 0, %v48
    %v50 = vrot.slane %v45, %v49
    %v51 = vmul.f32 %v50, %v27
    %v52 = vlaneseq
    %v53 = vshrl.u32 %v52, 7
    %v54 = vlaneseq
    %v55 = vand.u32 %v54, 127
    %vm56 = vcmp.eq.s32.totalorder %v53, 5
    %vm57 = vcmp.eq.s32.totalorder %v55, 5
    %vm58 = vmand %vm56, %vm57
    %v59 = vsel %vm58, 1.0, 0.0
    %vm60 = vcmask 64512
    %61 = vst.msk [vmem:[#allocation2] sm:$0xff] %vm60, %v59
    %vm62 = vcmask 36864
    %63 = vst.msk [vmem:[#allocation2] sm:$0x1f] %vm62, %v41
    %vm64 = vcmask 32768
    %65 = vst.msk [vmem:[#allocation2 + $0x5] sm:$0x1] %vm64, %v51
    %v66 = vld [vmem:[#allocation2] sm:$0xff]
    %68 = vset.pattern.permute.xlu0 0
    %69 = vperm.xlu0 %68, %v66
    %v70 = vpop.permute.xlu0 %69
    %v72 = vlaneseq
    %v73 = vshrl.u32 %v72, 7
    %v74 = vsub.s32 0, %v73
    %v75 = vrot.slane %v66, %v74
    %v76 = vmul.f32 %v70, %v75
    %77 = vset.pattern.permute.xlu0 1
    %78 = vperm.xlu0 %77, %v66
    %v79 = vpop.permute.xlu0 %78
    %v81 = vlaneseq
    %v82 = vshrl.u32 %v81, 7
    %v83 = vsub.s32 1, %v82
    %v84 = vrot.slane %v66, %v83
    %v85 = vmul.f32 %v79, %v84
    %v86 = vadd.f32 %v76, %v85
    %87 = vset.pattern.permute.xlu0 2
    %88 = vperm.xlu0 %87, %v66
    %v89 = vpop.permute.xlu0 %88
    %v91 = vlaneseq
    %v92 = vshrl.u32 %v91, 7
    %v93 = vsub.s32 2, %v92
    %v94 = vrot.slane %v66, %v93
    %v95 = vmul.f32 %v89, %v94
    %v96 = vadd.f32 %v86, %v95
    %97 = vset.pattern.permute.xlu0 3
    %98 = vperm.xlu0 %97, %v66
    %v99 = vpop.permute.xlu0 %98
    %v101 = vlaneseq
    %v102 = vshrl.u32 %v101, 7
    %v103 = vsub.s32 3, %v102
    %v104 = vrot.slane %v66, %v103
    %v105 = vmul.f32 %v99, %v104
    %v106 = vadd.f32 %v96, %v105
    %107 = vset.pattern.permute.xlu0 4
    %108 = vperm.xlu0 %107, %v66
    %v109 = vpop.permute.xlu0 %108
    %v111 = vlaneseq
    %v112 = vshrl.u32 %v111, 7
    %v113 = vsub.s32 4, %v112
    %v114 = vrot.slane %v66, %v113
    %v115 = vmul.f32 %v109, %v114
    %v116 = vadd.f32 %v106, %v115
    %117 = vset.pattern.permute.xlu0 5
    %118 = vperm.xlu0 %117, %v66
    %v119 = vpop.permute.xlu0 %118
    %v121 = vlaneseq
    %v122 = vshrl.u32 %v121, 7
    %v123 = vsub.s32 5, %v122
    %v124 = vrot.slane %v66, %v123
    %v125 = vmul.f32 %v119, %v124
    %v126 = vadd.f32 %v116, %v125
    %128 = vset.pattern.permute.xlu0 0
    %129 = vperm.xlu0 %128, %v126
    %v130 = vpop.permute.xlu0 %129
    %v132 = vlaneseq
    %v133 = vshrl.u32 %v132, 7
    %v134 = vsub.s32 0, %v133
    %v135 = vrot.slane %v126, %v134
    %v136 = vmul.f32 %v130, %v135
    %137 = vset.pattern.permute.xlu0 1
    %138 = vperm.xlu0 %137, %v126
    %v139 = vpop.permute.xlu0 %138
    %v141 = vlaneseq
    %v142 = vshrl.u32 %v141, 7
    %v143 = vsub.s32 1, %v142
    %v144 = vrot.slane %v126, %v143
    %v145 = vmul.f32 %v139, %v144
    %v146 = vadd.f32 %v136, %v145
    %147 = vset.pattern.permute.xlu0 2
    %148 = vperm.xlu0 %147, %v126
    %v149 = vpop.permute.xlu0 %148
    %v151 = vlaneseq
    %v152 = vshrl.u32 %v151, 7
    %v153 = vsub.s32 2, %v152
    %v154 = vrot.slane %v126, %v153
    %v155 = vmul.f32 %v149, %v154
    %v156 = vadd.f32 %v146, %v155
    %157 = vset.pattern.permute.xlu0 3
    %158 = vperm.xlu0 %157, %v126
    %v159 = vpop.permute.xlu0 %158
    %v161 = vlaneseq
    %v162 = vshrl.u32 %v161, 7
    %v163 = vsub.s32 3, %v162
    %v164 = vrot.slane %v126, %v163
    %v165 = vmul.f32 %v159, %v164
    %v166 = vadd.f32 %v156, %v165
    %167 = vset.pattern.permute.xlu0 4
    %168 = vperm.xlu0 %167, %v126
    %v169 = vpop.permute.xlu0 %168
    %v171 = vlaneseq
    %v172 = vshrl.u32 %v171, 7
    %v173 = vsub.s32 4, %v172
    %v174 = vrot.slane %v126, %v173
    %v175 = vmul.f32 %v169, %v174
    %v176 = vadd.f32 %v166, %v175
    %177 = vset.pattern.permute.xlu0 5
    %178 = vperm.xlu0 %177, %v126
    %v179 = vpop.permute.xlu0 %178
    %v181 = vlaneseq
    %v182 = vshrl.u32 %v181, 7
    %v183 = vsub.s32 5, %v182
    %v184 = vrot.slane %v126, %v183
    %v185 = vmul.f32 %v179, %v184
    %v186 = vadd.f32 %v176, %v185
    %188 = vset.pattern.permute.xlu0 0
    %189 = vperm.xlu0 %188, %v186
    %v190 = vpop.permute.xlu0 %189
    %v192 = vlaneseq
    %v193 = vshrl.u32 %v192, 7
    %v194 = vsub.s32 0, %v193
    %v195 = vrot.slane %v186, %v194
    %v196 = vmul.f32 %v190, %v195
    %197 = vset.pattern.permute.xlu0 1
    %198 = vperm.xlu0 %197, %v186
    %v199 = vpop.permute.xlu0 %198
    %v201 = vlaneseq
    %v202 = vshrl.u32 %v201, 7
    %v203 = vsub.s32 1, %v202
    %v204 = vrot.slane %v186, %v203
    %v205 = vmul.f32 %v199, %v204
    %v206 = vadd.f32 %v196, %v205
    %207 = vset.pattern.permute.xlu0 2
    %208 = vperm.xlu0 %207, %v186
    %v209 = vpop.permute.xlu0 %208
    %v211 = vlaneseq
    %v212 = vshrl.u32 %v211, 7
    %v213 = vsub.s32 2, %v212
    %v214 = vrot.slane %v186, %v213
    %v215 = vmul.f32 %v209, %v214
    %v216 = vadd.f32 %v206, %v215
    %217 = vset.pattern.permute.xlu0 3
    %218 = vperm.xlu0 %217, %v186
    %v219 = vpop.permute.xlu0 %218
    %v221 = vlaneseq
    %v222 = vshrl.u32 %v221, 7
    %v223 = vsub.s32 3, %v222
    %v224 = vrot.slane %v186, %v223
    %v225 = vmul.f32 %v219, %v224
    %v226 = vadd.f32 %v216, %v225
    %227 = vset.pattern.permute.xlu0 4
    %228 = vperm.xlu0 %227, %v186
    %v229 = vpop.permute.xlu0 %228
    %v231 = vlaneseq
    %v232 = vshrl.u32 %v231, 7
    %v233 = vsub.s32 4, %v232
    %v234 = vrot.slane %v186, %v233
    %v235 = vmul.f32 %v229, %v234
    %v236 = vadd.f32 %v226, %v235
    %237 = vset.pattern.permute.xlu0 5
    %238 = vperm.xlu0 %237, %v186
    %v239 = vpop.permute.xlu0 %238
    %v241 = vlaneseq
    %v242 = vshrl.u32 %v241, 7
    %v243 = vsub.s32 5, %v242
    %v244 = vrot.slane %v186, %v243
    %v245 = vmul.f32 %v239, %v244
    %v246 = vadd.f32 %v236, %v245
    %248 = vset.pattern.permute.xlu0 0
    %249 = vperm.xlu0 %248, %v246
    %v250 = vpop.permute.xlu0 %249
    %v252 = vlaneseq
    %v253 = vshrl.u32 %v252, 7
    %v254 = vsub.s32 0, %v253
    %v255 = vrot.slane %v246, %v254
    %v256 = vmul.f32 %v250, %v255
    %257 = vset.pattern.permute.xlu0 1
    %258 = vperm.xlu0 %257, %v246
    %v259 = vpop.permute.xlu0 %258
    %v261 = vlaneseq
    %v262 = vshrl.u32 %v261, 7
    %v263 = vsub.s32 1, %v262
    %v264 = vrot.slane %v246, %v263
    %v265 = vmul.f32 %v259, %v264
    %v266 = vadd.f32 %v256, %v265
    %267 = vset.pattern.permute.xlu0 2
    %268 = vperm.xlu0 %267, %v246
    %v269 = vpop.permute.xlu0 %268
    %v271 = vlaneseq
    %v272 = vshrl.u32 %v271, 7
    %v273 = vsub.s32 2, %v272
    %v274 = vrot.slane %v246, %v273
    %v275 = vmul.f32 %v269, %v274
    %v276 = vadd.f32 %v266, %v275
    %277 = vset.pattern.permute.xlu0 3
    %278 = vperm.xlu0 %277, %v246
    %v279 = vpop.permute.xlu0 %278
    %v281 = vlaneseq
    %v282 = vshrl.u32 %v281, 7
    %v283 = vsub.s32 3, %v282
    %v284 = vrot.slane %v246, %v283
    %v285 = vmul.f32 %v279, %v284
    %v286 = vadd.f32 %v276, %v285
    %287 = vset.pattern.permute.xlu0 4
    %288 = vperm.xlu0 %287, %v246
    %v289 = vpop.permute.xlu0 %288
    %v291 = vlaneseq
    %v292 = vshrl.u32 %v291, 7
    %v293 = vsub.s32 4, %v292
    %v294 = vrot.slane %v246, %v293
    %v295 = vmul.f32 %v289, %v294
    %v296 = vadd.f32 %v286, %v295
    %297 = vset.pattern.permute.xlu0 5
    %298 = vperm.xlu0 %297, %v246
    %v299 = vpop.permute.xlu0 %298
    %v301 = vlaneseq
    %v302 = vshrl.u32 %v301, 7
    %v303 = vsub.s32 5, %v302
    %v304 = vrot.slane %v246, %v303
    %v305 = vmul.f32 %v299, %v304
    %v306 = vadd.f32 %v296, %v305
    %308 = vset.pattern.permute.xlu0 0
    %309 = vperm.xlu0 %308, %v306
    %v310 = vpop.permute.xlu0 %309
    %v312 = vlaneseq
    %v313 = vshrl.u32 %v312, 7
    %v314 = vsub.s32 0, %v313
    %v315 = vrot.slane %v306, %v314
    %v316 = vmul.f32 %v310, %v315
    %317 = vset.pattern.permute.xlu0 1
    %318 = vperm.xlu0 %317, %v306
    %v319 = vpop.permute.xlu0 %318
    %v321 = vlaneseq
    %v322 = vshrl.u32 %v321, 7
    %v323 = vsub.s32 1, %v322
    %v324 = vrot.slane %v306, %v323
    %v325 = vmul.f32 %v319, %v324
    %v326 = vadd.f32 %v316, %v325
    %327 = vset.pattern.permute.xlu0 2
    %328 = vperm.xlu0 %327, %v306
    %v329 = vpop.permute.xlu0 %328
    %v331 = vlaneseq
    %v332 = vshrl.u32 %v331, 7
    %v333 = vsub.s32 2, %v332
    %v334 = vrot.slane %v306, %v333
    %v335 = vmul.f32 %v329, %v334
    %v336 = vadd.f32 %v326, %v335
    %337 = vset.pattern.permute.xlu0 3
    %338 = vperm.xlu0 %337, %v306
    %v339 = vpop.permute.xlu0 %338
    %v341 = vlaneseq
    %v342 = vshrl.u32 %v341, 7
    %v343 = vsub.s32 3, %v342
    %v344 = vrot.slane %v306, %v343
    %v345 = vmul.f32 %v339, %v344
    %v346 = vadd.f32 %v336, %v345
    %347 = vset.pattern.permute.xlu0 4
    %348 = vperm.xlu0 %347, %v306
    %v349 = vpop.permute.xlu0 %348
    %v351 = vlaneseq
    %v352 = vshrl.u32 %v351, 7
    %v353 = vsub.s32 4, %v352
    %v354 = vrot.slane %v306, %v353
    %v355 = vmul.f32 %v349, %v354
    %v356 = vadd.f32 %v346, %v355
    %357 = vset.pattern.permute.xlu0 5
    %358 = vperm.xlu0 %357, %v306
    %v359 = vpop.permute.xlu0 %358
    %v361 = vlaneseq
    %v362 = vshrl.u32 %v361, 7
    %v363 = vsub.s32 5, %v362
    %v364 = vrot.slane %v306, %v363
    %v365 = vmul.f32 %v359, %v364
    %v366 = vadd.f32 %v356, %v365
    %v367 = vlaneseq
    %v368 = vshrl.u32 %v367, 7
    %v369 = vsub.s32 0, %v368
    %v370 = vrot.slane %v366, %v369
    %v371 = vmul.f32 %v190, %v370
    %v372 = vlaneseq
    %v373 = vshrl.u32 %v372, 7
    %v374 = vsub.s32 1, %v373
    %v375 = vrot.slane %v366, %v374
    %v376 = vmul.f32 %v199, %v375
    %v377 = vadd.f32 %v371, %v376
    %v378 = vlaneseq
    %v379 = vshrl.u32 %v378, 7
    %v380 = vsub.s32 2, %v379
    %v381 = vrot.slane %v366, %v380
    %v382 = vmul.f32 %v209, %v381
    %v383 = vadd.f32 %v377, %v382
    %v384 = vlaneseq
    %v385 = vshrl.u32 %v384, 7
    %v386 = vsub.s32 3, %v385
    %v387 = vrot.slane %v366, %v386
    %v388 = vmul.f32 %v219, %v387
    %v389 = vadd.f32 %v383, %v388
    %v390 = vlaneseq
    %v391 = vshrl.u32 %v390, 7
    %v392 = vsub.s32 4, %v391
    %v393 = vrot.slane %v366, %v392
    %v394 = vmul.f32 %v229, %v393
    %v395 = vadd.f32 %v389, %v394
    %v396 = vlaneseq
    %v397 = vshrl.u32 %v396, 7
    %v398 = vsub.s32 5, %v397
    %v399 = vrot.slane %v366, %v398
    %v400 = vmul.f32 %v239, %v399
    %v401 = vadd.f32 %v395, %v400
    %403 = vset.pattern.permute.xlu0 0
    %404 = vperm.xlu0 %403, %v366
    %v405 = vpop.permute.xlu0 %404
    %v407 = vmul.f32 %v405, %v370
    %408 = vset.pattern.permute.xlu0 1
    %409 = vperm.xlu0 %408, %v366
    %v410 = vpop.permute.xlu0 %409
    %v412 = vmul.f32 %v410, %v375
    %v413 = vadd.f32 %v407, %v412
    %414 = vset.pattern.permute.xlu0 2
    %415 = vperm.xlu0 %414, %v366
    %v416 = vpop.permute.xlu0 %415
    %v418 = vmul.f32 %v416, %v381
    %v419 = vadd.f32 %v413, %v418
    %420 = vset.pattern.permute.xlu0 3
    %421 = vperm.xlu0 %420, %v366
    %v422 = vpop.permute.xlu0 %421
    %v424 = vmul.f32 %v422, %v387
    %v425 = vadd.f32 %v419, %v424
    %426 = vset.pattern.permute.xlu0 4
    %427 = vperm.xlu0 %426, %v366
    %v428 = vpop.permute.xlu0 %427
    %v430 = vmul.f32 %v428, %v393
    %v431 = vadd.f32 %v425, %v430
    %432 = vset.pattern.permute.xlu0 5
    %433 = vperm.xlu0 %432, %v366
    %v434 = vpop.permute.xlu0 %433
    %v436 = vmul.f32 %v434, %v399
    %v437 = vadd.f32 %v431, %v436
    %439 = vset.pattern.permute.xlu0 0
    %440 = vperm.xlu0 %439, %v401
    %v441 = vpop.permute.xlu0 %440
    %v443 = vlaneseq
    %v444 = vshrl.u32 %v443, 7
    %v445 = vsub.s32 0, %v444
    %v446 = vrot.slane %v437, %v445
    %v447 = vmul.f32 %v441, %v446
    %448 = vset.pattern.permute.xlu0 1
    %449 = vperm.xlu0 %448, %v401
    %v450 = vpop.permute.xlu0 %449
    %v452 = vlaneseq
    %v453 = vshrl.u32 %v452, 7
    %v454 = vsub.s32 1, %v453
    %v455 = vrot.slane %v437, %v454
    %v456 = vmul.f32 %v450, %v455
    %v457 = vadd.f32 %v447, %v456
    %458 = vset.pattern.permute.xlu0 2
    %459 = vperm.xlu0 %458, %v401
    %v460 = vpop.permute.xlu0 %459
    %v462 = vlaneseq
    %v463 = vshrl.u32 %v462, 7
    %v464 = vsub.s32 2, %v463
    %v465 = vrot.slane %v437, %v464
    %v466 = vmul.f32 %v460, %v465
    %v467 = vadd.f32 %v457, %v466
    %468 = vset.pattern.permute.xlu0 3
    %469 = vperm.xlu0 %468, %v401
    %v470 = vpop.permute.xlu0 %469
    %v472 = vlaneseq
    %v473 = vshrl.u32 %v472, 7
    %v474 = vsub.s32 3, %v473
    %v475 = vrot.slane %v437, %v474
    %v476 = vmul.f32 %v470, %v475
    %v477 = vadd.f32 %v467, %v476
    %478 = vset.pattern.permute.xlu0 4
    %479 = vperm.xlu0 %478, %v401
    %v480 = vpop.permute.xlu0 %479
    %v482 = vlaneseq
    %v483 = vshrl.u32 %v482, 7
    %v484 = vsub.s32 4, %v483
    %v485 = vrot.slane %v437, %v484
    %v486 = vmul.f32 %v480, %v485
    %v487 = vadd.f32 %v477, %v486
    %488 = vset.pattern.permute.xlu0 5
    %489 = vperm.xlu0 %488, %v401
    %v490 = vpop.permute.xlu0 %489
    %v492 = vlaneseq
    %v493 = vshrl.u32 %v492, 7
    %v494 = vsub.s32 5, %v493
    %v495 = vrot.slane %v437, %v494
    %v496 = vmul.f32 %v490, %v495
    %v497 = vadd.f32 %v487, %v496
    %499 = vset.pattern.permute.xlu0 0
    %500 = vperm.xlu0 %499, %v23
    %v501 = vpop.permute.xlu0 %500
    %504 = vset.pattern.permute.xlu0 0
    %505 = vperm.xlu0 %504, %v24
    %v506 = vpop.permute.xlu0 %505
    %v508 = vlaneseq
    %v509 = vshrl.u32 %v508, 7
    %v510 = vsub.s32 0, %v509
    %v511 = vrot.slane %v497, %v510
    %v512 = vmul.f32 %v501, %v511
    %v513 = vmul.f32 %v506, %v511
    %514 = vset.pattern.permute.xlu0 1
    %515 = vperm.xlu0 %514, %v23
    %v516 = vpop.permute.xlu0 %515
    %518 = vset.pattern.permute.xlu0 1
    %519 = vperm.xlu0 %518, %v24
    %v520 = vpop.permute.xlu0 %519
    %v522 = vlaneseq
    %v523 = vshrl.u32 %v522, 7
    %v524 = vsub.s32 1, %v523
    %v525 = vrot.slane %v497, %v524
    %v526 = vmul.f32 %v516, %v525
    %v527 = vmul.f32 %v520, %v525
    %v528 = vadd.f32 %v512, %v526
    %v529 = vadd.f32 %v513, %v527
    %530 = vset.pattern.permute.xlu0 2
    %531 = vperm.xlu0 %530, %v23
    %v532 = vpop.permute.xlu0 %531
    %534 = vset.pattern.permute.xlu0 2
    %535 = vperm.xlu0 %534, %v24
    %v536 = vpop.permute.xlu0 %535
    %v538 = vlaneseq
    %v539 = vshrl.u32 %v538, 7
    %v540 = vsub.s32 2, %v539
    %v541 = vrot.slane %v497, %v540
    %v542 = vmul.f32 %v532, %v541
    %v543 = vmul.f32 %v536, %v541
    %v544 = vadd.f32 %v528, %v542
    %v545 = vadd.f32 %v529, %v543
    %546 = vset.pattern.permute.xlu0 3
    %547 = vperm.xlu0 %546, %v23
    %v548 = vpop.permute.xlu0 %547
    %550 = vset.pattern.permute.xlu0 3
    %551 = vperm.xlu0 %550, %v24
    %v552 = vpop.permute.xlu0 %551
    %v554 = vlaneseq
    %v555 = vshrl.u32 %v554, 7
    %v556 = vsub.s32 3, %v555
    %v557 = vrot.slane %v497, %v556
    %v558 = vmul.f32 %v548, %v557
    %v559 = vmul.f32 %v552, %v557
    %v560 = vadd.f32 %v544, %v558
    %v561 = vadd.f32 %v545, %v559
    %562 = vset.pattern.permute.xlu0 4
    %563 = vperm.xlu0 %562, %v23
    %v564 = vpop.permute.xlu0 %563
    %566 = vset.pattern.permute.xlu0 4
    %567 = vperm.xlu0 %566, %v24
    %v568 = vpop.permute.xlu0 %567
    %v570 = vlaneseq
    %v571 = vshrl.u32 %v570, 7
    %v572 = vsub.s32 4, %v571
    %v573 = vrot.slane %v497, %v572
    %v574 = vmul.f32 %v564, %v573
    %v575 = vmul.f32 %v568, %v573
    %v576 = vadd.f32 %v560, %v574
    %v577 = vadd.f32 %v561, %v575
    %v578 = vlaneseq
    %v579 = vshrl.u32 %v578, 7
    %v580 = vsub.s32 5, %v579
    %v581 = vrot.slane %v497, %v580
    %v582 = vadd.f32 %v576, %v581
    %v583 = vadd.f32 %v577, %v581
    %v584 = vmul.f32 %v582, %v582
    %v585 = vmul.f32 %v583, %v583
    %vm586 = vcmask 39936
    %v587 = vsel %vm586, %v584, 0.0
    %vm588 = vcmask 33792
    %v589 = vsel %vm588, %v585, 0.0
    %v590 = vadd.f32 %v587, %v589
    %591 = vadd.xlane.f32.xlu0 %v590
    %v592 = vpop.xlane.xlu0 %591
    %v593 = vrot.slane %v592, 4
    %v594 = vadd.f32 %v592, %v593
    %v595 = vrot.slane %v594, 2
    %v596 = vadd.f32 %v594, %v595
    %v597 = vrot.slane %v596, 1
    %v598 = vadd.f32 %v596, %v597
    %s599 = vtos %v598
    %s600 = scalar_lea.smem [#allocation4], 0
    %601 = sst [smem:[%s600]] %s599
    // Predicated region
    $region22: #{simulation_forward.1} parent=1 // pred_check
      _
    $region23: #{simulation_forward.1} parent=1 // pred_check_branch
      %603 = sbr.rel (0) target = $region25
    $region24: #{simulation_forward.1} parent=1 // pred_region
      %s605 = ssub.s32 16, 16
      %606 = vsyncadd [#allocation5], %s605
      %609 = dma.smem_to_hbm [#allocation4], 16, %s5, [#allocation5]
    $region25: #{simulation_forward.1} parent=1 // pred_fallthru
      _
    // Predicated region
    $region26: #{simulation_forward.1} parent=1 // pred_check
      _
    $region27: #{simulation_forward.1} parent=1 // pred_check_branch
      %611 = sbr.rel (0) target = $region29
    $region28: #{simulation_forward.1} parent=1 // pred_region
      %612 = dma.done [#allocation5], 16
    $region29: #{simulation_forward.1} parent=1 // pred_fallthru
      _
    %613 = sfence
    %614 = vsyncpa [#allocation5], 1

</llo_original>
